<compile_context>
chip_gen: v7x
topology: tpu7x:2x2x1
jax: 0.10.0
libtpu: 0.0.40
codegen_flags: <defaults>
</compile_context>

<pallas_src>
import functools

import jax
import jax.numpy as jnp
from jax.experimental import pallas as pl
from jax.experimental.pallas import tpu as pltpu

_LANES = 128
_BF16_SUBLANES = 16          # bf16 vregs pack 16 sublanes -> pad batch to 16
_SINGLE_TILE_ROWS = 4096     # largest batch handled grid-free (one invocation)
_MAX_TILE_ROWS = 4096        # per-tile row cap when gridding over huge batches


def _round_up(n, m):
    return ((n + m - 1) // m) * m


def _silu(x):
    # x * sigmoid(x).  The exp argument is clamped so exp never overflows to
    # inf; exp + the approximate reciprocal both run on the EUP, keeping the
    # VPU slots free.  approx=True adds ~2^-12 relative error (well under tol).
    e = jnp.exp(jnp.minimum(-x, 80.0))
    return x * pl.reciprocal(1.0 + e, approx=True)


def _mlp_kernel(x_ref, w1_ref, b1_ref, w2_ref, b2_ref, o_ref):
    """(x @ W1 + b1) -> silu -> (@ W2 + b2) -> silu, all operands VMEM-resident.

    x arrives pre-gathered and already bf16; both matmuls are bf16 MXU operands
    with f32 accumulation; bias + SiLU stay f32 on the VPU/EUP.
    """
    h = jnp.dot(x_ref[...], w1_ref[...],
                preferred_element_type=jnp.float32) + b1_ref[...]
    h = _silu(h)
    y = jnp.dot(h.astype(jnp.bfloat16), w2_ref[...],
                preferred_element_type=jnp.float32) + b2_ref[...]
    o_ref[...] = _silu(y)


def build_embedding(embed_size, max_steps):
    """Matches TimeStepEmbedding._build_embedding: (max_steps, 2*embed_size)."""
    steps = jnp.arange(max_steps, dtype=jnp.float32)[:, None]
    dims = jnp.arange(embed_size, dtype=jnp.float32)[None, :]
    table = steps * 10.0 ** (dims * 4.0 / embed_size)
    return jnp.concatenate([jnp.sin(table), jnp.cos(table)], axis=1)


def init_params(key, embed_size):
    """Deterministic synthetic params with PyTorch nn.Linear shapes (out, in)."""
    k1, k2, k3, k4 = jax.random.split(key, 4)
    in1 = embed_size * 2
    lim1 = 1.0 / jnp.sqrt(in1)
    lim2 = 1.0 / jnp.sqrt(embed_size)
    w1 = jax.random.uniform(k1, (embed_size, in1), jnp.float32, -lim1, lim1)
    b1 = jax.random.uniform(k2, (embed_size,), jnp.float32, -lim1, lim1)
    w2 = jax.random.uniform(k3, (embed_size, embed_size), jnp.float32, -lim2, lim2)
    b2 = jax.random.uniform(k4, (embed_size,), jnp.float32, -lim2, lim2)
    return w1, b1, w2, b2


def prepare_params(embedding, w1, b1, w2, b2):
    """One-time prep (outside the hot path): transpose weights to (in, out),
    zero-pad feature axes to 128-lane multiples, cast MXU operands to bf16."""
    embed_size, in1 = w1.shape
    max_steps = embedding.shape[0]
    ep = _round_up(embed_size, _LANES)
    in1p = _round_up(in1, _LANES)

    emb_p = jnp.zeros((max_steps, in1p), jnp.bfloat16).at[:, :in1].set(
        embedding.astype(jnp.bfloat16))
    w1_t = jnp.zeros((in1p, ep), jnp.bfloat16).at[:in1, :embed_size].set(
        w1.T.astype(jnp.bfloat16))
    b1_p = jnp.zeros((1, ep), jnp.float32).at[0, :embed_size].set(
        b1.astype(jnp.float32))
    w2_t = jnp.zeros((ep, ep), jnp.bfloat16).at[:embed_size, :embed_size].set(
        w2.T.astype(jnp.bfloat16))
    b2_p = jnp.zeros((1, ep), jnp.float32).at[0, :embed_size].set(
        b2.astype(jnp.float32))
    return emb_p, w1_t, b1_p, w2_t, b2_p


@functools.partial(jax.jit, static_argnames=("embed_size",))
def timestep_embedding_forward(diffusion_step, prepped, *, embed_size):
    """diffusion_step: (...) int -> (..., embed_size) f32."""
    emb_p, w1_t, b1_p, w2_t, b2_p = prepped
    orig_shape = diffusion_step.shape
    idx = diffusion_step.reshape(-1).astype(jnp.int32)
    b = idx.shape[0]
    in1p = emb_p.shape[1]
    ep = w1_t.shape[1]

    # Static (shape-derived) tiling decision.
    if b <= _SINGLE_TILE_ROWS:
        num_tiles = 1
        tile = max(_BF16_SUBLANES, _round_up(b, _BF16_SUBLANES))
    else:
        num_tiles = -(-b // _MAX_TILE_ROWS)
        num_tiles += num_tiles % 2      # even tile count -> balanced on v7x's 2 TCs
        tile = _round_up(-(-b // num_tiles), _BF16_SUBLANES)
    bp = tile * num_tiles

    # Row gather of the pre-padded bf16 table: one tiny XLA op outside the
    # kernel (padded rows index row 0, which is valid, and are sliced off).
    idx_p = jnp.pad(idx, (0, bp - b))
    x = emb_p[idx_p]                    # (bp, in1p) bf16, lane-dense

    if num_tiles == 1:
        # Grid-free: whole arrays in VMEM, zero pipeline/step overhead.
        vmem = pl.BlockSpec(memory_space=pltpu.MemorySpace.VMEM)
        out = pl.pallas_call(
            _mlp_kernel,
            out_shape=jax.ShapeDtypeStruct((bp, ep), jnp.float32),
            in_specs=[vmem] * 5,
            out_specs=vmem,
        )(x, w1_t, b1_p, w2_t, b2_p)
    else:
        # Huge batch: even number of equal batch tiles on a "parallel" axis.
        # Weights/biases use constant index maps, so Pallas skips re-DMA across
        # steps; they total ~100 KB so default double-buffering is noise.
        out = pl.pallas_call(
            _mlp_kernel,
            out_shape=jax.ShapeDtypeStruct((bp, ep), jnp.float32),
            grid=(num_tiles,),
            in_specs=[
                pl.BlockSpec((tile, in1p), lambda i: (i, 0)),
                pl.BlockSpec(w1_t.shape, lambda i: (0, 0)),
                pl.BlockSpec(b1_p.shape, lambda i: (0, 0)),
                pl.BlockSpec(w2_t.shape, lambda i: (0, 0)),
                pl.BlockSpec(b2_p.shape, lambda i: (0, 0)),
            ],
            out_specs=pl.BlockSpec((tile, ep), lambda i: (i, 0)),
            compiler_params=pltpu.CompilerParams(
                dimension_semantics=("parallel",)),
        )(x, w1_t, b1_p, w2_t, b2_p)

    return out[:b, :embed_size].reshape(*orig_shape, embed_size)


def _reference_forward(diffusion_step, embedding, w1, b1, w2, b2):
    x = embedding[diffusion_step.reshape(-1)]
    x = x @ w1.T + b1
    x = jax.nn.silu(x)
    x = x @ w2.T + b2
    x = jax.nn.silu(x)
    return x.reshape(*diffusion_step.shape, w1.shape[0])


if __name__ == "__main__":
    embed_size = 32
    max_steps = 1000
    batch = 8

    key = jax.random.PRNGKey(0)
    k_params, k_steps, k_mid, k_big = jax.random.split(key, 4)

    embedding = build_embedding(embed_size, max_steps)
    w1, b1, w2, b2 = init_params(k_params, embed_size)
    prepped = prepare_params(embedding, w1, b1, w2, b2)   # one-time weight prep

    # Small batch (grid-free path, padded to 16 rows).
    diffusion_step = jax.random.randint(k_steps, (batch,), 0, max_steps, dtype=jnp.int32)
    out = jax.block_until_ready(
        timestep_embedding_forward(diffusion_step, prepped, embed_size=embed_size))
    ref = _reference_forward(diffusion_step, embedding, w1, b1, w2, b2)
    assert out.shape == (batch, embed_size), out.shape
    # bf16 MXU operands / bf16 table -> compare against f32 ref with bf16 tolerance.
    assert jnp.allclose(out, ref, rtol=2e-2, atol=2e-2), float(jnp.max(jnp.abs(out - ref)))

    # Medium batch (B=1000): now a single grid-free invocation.
    mid_steps = jax.random.randint(k_mid, (1000,), 0, max_steps, dtype=jnp.int32)
    out_mid = jax.block_until_ready(
        timestep_embedding_forward(mid_steps, prepped, embed_size=embed_size))
    ref_mid = _reference_forward(mid_steps, embedding, w1, b1, w2, b2)
    assert out_mid.shape == (1000, embed_size), out_mid.shape
    assert jnp.allclose(out_mid, ref_mid, rtol=2e-2, atol=2e-2), \
        float(jnp.max(jnp.abs(out_mid - ref_mid)))

    # Huge batch (B=5000): exercises the gridded path (2 balanced "parallel" tiles).
    big_steps = jax.random.randint(k_big, (5000,), 0, max_steps, dtype=jnp.int32)
    out_big = jax.block_until_ready(
        timestep_embedding_forward(big_steps, prepped, embed_size=embed_size))
    ref_big = _reference_forward(big_steps, embedding, w1, b1, w2, b2)
    assert out_big.shape == (5000, embed_size), out_big.shape
    assert jnp.allclose(out_big, ref_big, rtol=2e-2, atol=2e-2), \
        float(jnp.max(jnp.abs(out_big - ref_big)))

    print("KERNEL_OK")
</pallas_src>

<mosaic_0001>
module attributes {stable_mosaic.version = 11 : i64} {
  func.func @_mlp_kernel(%arg0: memref<16x128xbf16, #tpu.memory_space<vmem>>, %arg1: memref<128x128xbf16, #tpu.memory_space<vmem>>, %arg2: memref<1x128xf32, #tpu.memory_space<vmem>>, %arg3: memref<128x128xbf16, #tpu.memory_space<vmem>>, %arg4: memref<1x128xf32, #tpu.memory_space<vmem>>, %arg5: memref<16x128xf32, #tpu.memory_space<vmem>>) attributes {dimension_semantics = [], scalar_prefetch = 0 : i64, scratch_operands = 0 : i64, tpu.core_type = #tpu.core_type<tc>} {
    %c0 = arith.constant 0 : index
    %c0_0 = arith.constant 0 : index
    %0 = vector.load %arg0[%c0, %c0_0] : memref<16x128xbf16, #tpu.memory_space<vmem>>, vector<16x128xbf16>
    %c0_1 = arith.constant 0 : index
    %c0_2 = arith.constant 0 : index
    %1 = vector.load %arg1[%c0_1, %c0_2] : memref<128x128xbf16, #tpu.memory_space<vmem>>, vector<128x128xbf16>
    %cst = arith.constant dense<0.000000e+00> : vector<16x128xf32>
    %2 = tpu.matmul %0, %1, %cst {dimension_numbers = #tpu.dot_dimension_numbers<[1], [0], [0], [1], [0, 0, 1, 1], [], []>} : vector<16x128xbf16>, vector<128x128xbf16>, vector<16x128xf32> -> vector<16x128xf32>
    %c0_3 = arith.constant 0 : index
    %c0_4 = arith.constant 0 : index
    %3 = vector.load %arg2[%c0_3, %c0_4] : memref<1x128xf32, #tpu.memory_space<vmem>>, vector<1x128xf32>
    %4 = vector.broadcast %3 : vector<1x128xf32> to vector<16x128xf32>
    %5 = arith.addf %2, %4 : vector<16x128xf32>
    %cst_5 = arith.constant 0.000000e+00 : f32
    %6 = vector.broadcast %cst_5 : f32 to vector<16x128xf32>
    %7 = arith.subf %6, %5 : vector<16x128xf32>
    %cst_6 = arith.constant 8.000000e+01 : f32
    %8 = vector.broadcast %cst_6 : f32 to vector<16x128xf32>
    %9 = arith.minimumf %7, %8 : vector<16x128xf32>
    %10 = math.exp %9 : vector<16x128xf32>
    %cst_7 = arith.constant 1.000000e+00 : f32
    %11 = vector.broadcast %cst_7 : f32 to vector<16x128xf32>
    %12 = arith.addf %11, %10 : vector<16x128xf32>
    %13 = tpu.reciprocal %12 {approx = true} : vector<16x128xf32> -> vector<16x128xf32>
    %14 = arith.mulf %5, %13 : vector<16x128xf32>
    %15 = arith.truncf %14 : vector<16x128xf32> to vector<16x128xbf16>
    %c0_8 = arith.constant 0 : index
    %c0_9 = arith.constant 0 : index
    %16 = vector.load %arg3[%c0_8, %c0_9] : memref<128x128xbf16, #tpu.memory_space<vmem>>, vector<128x128xbf16>
    %cst_10 = arith.constant dense<0.000000e+00> : vector<16x128xf32>
    %17 = tpu.matmul %15, %16, %cst_10 {dimension_numbers = #tpu.dot_dimension_numbers<[1], [0], [0], [1], [0, 0, 1, 1], [], []>} : vector<16x128xbf16>, vector<128x128xbf16>, vector<16x128xf32> -> vector<16x128xf32>
    %c0_11 = arith.constant 0 : index
    %c0_12 = arith.constant 0 : index
    %18 = vector.load %arg4[%c0_11, %c0_12] : memref<1x128xf32, #tpu.memory_space<vmem>>, vector<1x128xf32>
    %19 = vector.broadcast %18 : vector<1x128xf32> to vector<16x128xf32>
    %20 = arith.addf %17, %19 : vector<16x128xf32>
    %cst_13 = arith.constant 0.000000e+00 : f32
    %21 = vector.broadcast %cst_13 : f32 to vector<16x128xf32>
    %22 = arith.subf %21, %20 : vector<16x128xf32>
    %cst_14 = arith.constant 8.000000e+01 : f32
    %23 = vector.broadcast %cst_14 : f32 to vector<16x128xf32>
    %24 = arith.minimumf %22, %23 : vector<16x128xf32>
    %25 = math.exp %24 : vector<16x128xf32>
    %cst_15 = arith.constant 1.000000e+00 : f32
    %26 = vector.broadcast %cst_15 : f32 to vector<16x128xf32>
    %27 = arith.addf %26, %25 : vector<16x128xf32>
    %28 = tpu.reciprocal %27 {approx = true} : vector<16x128xf32> -> vector<16x128xf32>
    %29 = arith.mulf %20, %28 : vector<16x128xf32>
    %c0_16 = arith.constant 0 : index
    %c0_17 = arith.constant 0 : index
    %30 = vector.load %arg5[%c0_16, %c0_17] : memref<16x128xf32, #tpu.memory_space<vmem>>, vector<16x128xf32>
    tpu.vector_store %arg5[%c0_16, %c0_17], %29 {strides = array<i32>} : memref<16x128xf32, #tpu.memory_space<vmem>>, vector<16x128xf32>,
    return
  }
}

</mosaic_0001>

<llo_original>
// kernel: timestep_embedding_forward.1
$region0: #{timestep_embedding_forward.1}
  #allocation0 [shape = 'u32[]', space=smem, size = 0x4, offset = 0x4, fixed_abs, tag = 'smem constant byte address 0x4 - core index']
  #allocation1 [shape = 'u32[144,128]{1,0:T(1,128)}', space=vmem, size = 0x12000, scoped, tag = 'internal scratch']
  %s0 = inlined_call_operand.vmem [shape: bf16[16,128], index: 0, kind: input, shape index: {}]
  %s1 = inlined_call_operand.vmem [shape: bf16[128,128], index: 1, kind: input, shape index: {}]
  %s2 = inlined_call_operand.vmem [shape: f32[1,128], index: 2, kind: input, shape index: {}]
  %s3 = inlined_call_operand.hbm [shape: bf16[128,128], index: 3, kind: input, shape index: {}]
  %s4 = inlined_call_operand.vmem [shape: f32[1,128], index: 4, kind: input, shape index: {}]
  %s5 = inlined_call_operand.vmem [shape: f32[16,128], index: 5, kind: output, shape index: {}]
  %s6 = sld [smem:[#allocation0]]
  $region34: #{timestep_embedding_forward.1} parent=0
    _
  %s8 = ssub.s32 1, %s6
  %s9 = scalar_select 0, %s8, %s6
  $region1: #{timestep_embedding_forward.1} parent=0
    #allocation2 [shape = 'u8[32768]{0}', space=vmem, size = 0x8000, scoped, tag = 'input window, operand 3, single buffered']
    #allocation3 [shape = 's32[1]{0}', space=sflag, size = 0x4, scoped, tag = 'scoped memory for timestep_embedding_forward.1']
    %10 = vsyncpa [#allocation3], 0
    // Predicated region
    $region2: #{timestep_embedding_forward.1} parent=1 // pred_check
      _
    $region3: #{timestep_embedding_forward.1} parent=1 // pred_check_branch
      %12 = sbr.rel (0) target = $region5
    $region4: #{timestep_embedding_forward.1} parent=1 // pred_region
      _
    $region5: #{timestep_embedding_forward.1} parent=1 // pred_fallthru
      _
    // Predicated region
    $region6: #{timestep_embedding_forward.1} parent=1 // pred_check
      _
    $region7: #{timestep_embedding_forward.1} parent=1 // pred_check_branch
      %14 = sbr.rel (0) target = $region9
    $region8: #{timestep_embedding_forward.1} parent=1 // pred_region
      _
    $region9: #{timestep_embedding_forward.1} parent=1 // pred_fallthru
      _
    // Predicated region
    $region10: #{timestep_embedding_forward.1} parent=1 // pred_check
      _
    $region11: #{timestep_embedding_forward.1} parent=1 // pred_check_branch
      %16 = sbr.rel (0) target = $region13
    $region12: #{timestep_embedding_forward.1} parent=1 // pred_region
      _
    $region13: #{timestep_embedding_forward.1} parent=1 // pred_fallthru
      _
    // Predicated region
    $region14: #{timestep_embedding_forward.1} parent=1 // pred_check
      _
    $region15: #{timestep_embedding_forward.1} parent=1 // pred_check_branch
      %18 = sbr.rel (0) target = $region17
    $region16: #{timestep_embedding_forward.1} parent=1 // pred_region
      %s20 = ssub.s32 1024, 1024
      %21 = vsyncadd [#allocation3], %s20
      %s22 = sshll.u32 [#allocation2], 4
      %s23 = int_to_ptr.vmem [resolvable:$true] %s22
      %28 = dma.hbm_to_vmem [thread:$0]  %s3, 1024, %s23, [#allocation3], 64, 64, 4
    $region17: #{timestep_embedding_forward.1} parent=1 // pred_fallthru
      _
    // Predicated region
    $region18: #{timestep_embedding_forward.1} parent=1 // pred_check
      _
    $region19: #{timestep_embedding_forward.1} parent=1 // pred_check_branch
      %30 = sbr.rel (0) target = $region21
    $region20: #{timestep_embedding_forward.1} parent=1 // pred_region
      _
    $region21: #{timestep_embedding_forward.1} parent=1 // pred_fallthru
      _
    // Predicated region
    $region22: #{timestep_embedding_forward.1} parent=1 // pred_check
      _
    $region23: #{timestep_embedding_forward.1} parent=1 // pred_check_branch
      %32 = sbr.rel (0) target = $region25
    $region24: #{timestep_embedding_forward.1} parent=1 // pred_region
      %33 = dma.done [#allocation3], 1024
    $region25: #{timestep_embedding_forward.1} parent=1 // pred_fallthru
      _
    %v35 = vld [vmem:[%s0] sm:$0xf]
    %v36 = vld [vmem:[%s0 + $0x4] sm:$0xf]
    %v37 = vld [vmem:[%s1] sm:$0xf]
    %v38 = vld [vmem:[%s1 + $0x4] sm:$0xf]
    %v39 = vld [vmem:[%s1 + $0x8] sm:$0xf]
    %v40 = vld [vmem:[%s1 + $0xc] sm:$0xf]
    %v41 = vld [vmem:[%s1 + $0x10] sm:$0xf]
    %v42 = vld [vmem:[%s1 + $0x14] sm:$0xf]
    %v43 = vld [vmem:[%s1 + $0x18] sm:$0xf]
    %v44 = vld [vmem:[%s1 + $0x1c] sm:$0xf]
    %v45 = vld [vmem:[%s1 + $0x20] sm:$0xf]
    %v46 = vld [vmem:[%s1 + $0x24] sm:$0xf]
    %v47 = vld [vmem:[%s1 + $0x28] sm:$0xf]
    %v48 = vld [vmem:[%s1 + $0x2c] sm:$0xf]
    %v49 = vld [vmem:[%s1 + $0x30] sm:$0xf]
    %v50 = vld [vmem:[%s1 + $0x34] sm:$0xf]
    %v51 = vld [vmem:[%s1 + $0x38] sm:$0xf]
    %v52 = vld [vmem:[%s1 + $0x3c] sm:$0xf]
    %v53 = vld [vmem:[%s2] sm:$0x1]
    %v55 = vlaneseq
    %v56 = vshrl.u32 %v55, 7
    %v57 = vsub.s32 0, %v56
    %v58 = vrot.slane %v53, %v57
    %v62 = vunpack.c.l.b16 %v35
    %v63 = vunpack.c.l.b16 %v36
    %v64 = vpack.c.b16 %v63, %v62
    %v82 = vunpack.c.l.b16 %v37
    %v83 = vunpack.c.l.b16 %v38
    %v84 = vunpack.c.l.b16 %v39
    %v85 = vunpack.c.l.b16 %v40
    %v86 = vunpack.c.l.b16 %v41
    %v87 = vunpack.c.l.b16 %v42
    %v88 = vunpack.c.l.b16 %v43
    %v89 = vunpack.c.l.b16 %v44
    %v90 = vunpack.c.l.b16 %v45
    %v91 = vunpack.c.l.b16 %v46
    %v92 = vunpack.c.l.b16 %v47
    %v93 = vunpack.c.l.b16 %v48
    %v94 = vunpack.c.l.b16 %v49
    %v95 = vunpack.c.l.b16 %v50
    %v96 = vunpack.c.l.b16 %v51
    %v97 = vunpack.c.l.b16 %v52
    %v98 = vpack.c.b16 %v83, %v82
    %v99 = vpack.c.b16 %v85, %v84
    %v100 = vpack.c.b16 %v87, %v86
    %v101 = vpack.c.b16 %v89, %v88
    %v102 = vpack.c.b16 %v91, %v90
    %v103 = vpack.c.b16 %v93, %v92
    %v104 = vpack.c.b16 %v95, %v94
    %v105 = vpack.c.b16 %v97, %v96
    %114 = vmatprep.subr.bf16.mxu0 0
    %115 = vmatpush1.bf16.msra.mxu0 %v98
    %116 = vmatprep.subr.bf16.mxu0 0
    %117 = vmatpush1.bf16.msra.mxu0 %v99
    %118 = vmatprep.subr.bf16.mxu0 0
    %119 = vmatpush1.bf16.msra.mxu0 %v100
    %120 = vmatprep.subr.bf16.mxu0 0
    %121 = vmatpush1.bf16.msra.mxu0 %v101
    %122 = vmatprep.subr.bf16.mxu0 0
    %123 = vmatpush1.bf16.msra.mxu0 %v102
    %124 = vmatprep.subr.bf16.mxu0 0
    %125 = vmatpush1.bf16.msra.mxu0 %v103
    %126 = vmatprep.subr.bf16.mxu0 0
    %127 = vmatpush1.bf16.msra.mxu0 %v104
    %128 = vmatprep.subr.bf16.mxu0 0
    %129 = vmatpush1.bf16.msra.mxu0 %v105
    %130 = vmatprep.subr.bf16.mxu0 0
    %131 = vmatpush1.bf16.msra.mxu0 0
    %132 = vmatprep.subr.bf16.mxu0 0
    %133 = vmatpush1.bf16.msra.mxu0 0
    %134 = vmatprep.subr.bf16.mxu0 0
    %135 = vmatpush1.bf16.msra.mxu0 0
    %136 = vmatprep.subr.bf16.mxu0 0
    %137 = vmatpush1.bf16.msra.mxu0 0
    %138 = vmatprep.subr.bf16.mxu0 0
    %139 = vmatpush1.bf16.msra.mxu0 0
    %140 = vmatprep.subr.bf16.mxu0 0
    %141 = vmatpush1.bf16.msra.mxu0 0
    %142 = vmatprep.subr.bf16.mxu0 0
    %143 = vmatpush1.bf16.msra.mxu0 0
    %144 = vmatprep.subr.bf16.mxu0 0
    %145 = vmatpush1.bf16.msra.mxu0 0
    %146 = vmatprep.mubr.bf16.mxu0 0
    %147 = vmatmul.mubr.bf16.gmra.mrb[0].mxu0 %v64
    %v148 = vpop.f32.mrb[0].mxu0
    %v149 = vadd.f32 %v58, %v148
    %v150 = vpop.f32.mrb[0].mxu0
    %v151 = vpop.f32.mrb[0].mxu0
    %v152 = vadd.f32 %v58, %v151
    %v153 = vpop.f32.mrb[0].mxu0
    %154 = vdwg.mxu0
    %v155 = vsub.f32 0.0, %v149
    %v156 = vsub.f32 0.0, %v152
    %v157 = vmin.f32 %v155, 80.0
    %v158 = vmin.f32 %v156, 80.0
    %v159 = vmul.f32 %v157, 1.442695
    %v160 = vpow.pop %v159
    %v161 = vmul.f32 %v158, 1.442695
    %v162 = vpow.pop %v161
    %v163 = vadd.f32 %v160, 1.0
    %v164 = vadd.f32 %v162, 1.0
    %v165 = vrcp.pop %v163
    %v166 = vrcp.pop %v164
    %v167 = vmul.f32 %v149, %v165
    %v168 = vmul.f32 %v152, %v166
    %v169 = vpack.c.bf16 %v168, %v167
    %v170 = vld [vmem:[#allocation2] sm:$0xf]
    %v171 = vld [vmem:[#allocation2 + $0x4] sm:$0xf]
    %v172 = vld [vmem:[#allocation2 + $0x8] sm:$0xf]
    %v173 = vld [vmem:[#allocation2 + $0xc] sm:$0xf]
    %v174 = vld [vmem:[#allocation2 + $0x10] sm:$0xf]
    %v175 = vld [vmem:[#allocation2 + $0x14] sm:$0xf]
    %v176 = vld [vmem:[#allocation2 + $0x18] sm:$0xf]
    %v177 = vld [vmem:[#allocation2 + $0x1c] sm:$0xf]
    %v178 = vld [vmem:[#allocation2 + $0x20] sm:$0xf]
    %v179 = vld [vmem:[#allocation2 + $0x24] sm:$0xf]
    %v180 = vld [vmem:[#allocation2 + $0x28] sm:$0xf]
    %v181 = vld [vmem:[#allocation2 + $0x2c] sm:$0xf]
    %v182 = vld [vmem:[#allocation2 + $0x30] sm:$0xf]
    %v183 = vld [vmem:[#allocation2 + $0x34] sm:$0xf]
    %v184 = vld [vmem:[#allocation2 + $0x38] sm:$0xf]
    %v185 = vld [vmem:[#allocation2 + $0x3c] sm:$0xf]
    %v186 = vld [vmem:[%s4] sm:$0x1]
    %v188 = vlaneseq
    %v189 = vshrl.u32 %v188, 7
    %v190 = vsub.s32 0, %v189
    %v191 = vrot.slane %v186, %v190
    %v209 = vunpack.c.l.b16 %v170
    %v210 = vunpack.c.l.b16 %v171
    %v211 = vunpack.c.l.b16 %v172
    %v212 = vunpack.c.l.b16 %v173
    %v213 = vunpack.c.l.b16 %v174
    %v214 = vunpack.c.l.b16 %v175
    %v215 = vunpack.c.l.b16 %v176
    %v216 = vunpack.c.l.b16 %v177
    %v217 = vunpack.c.l.b16 %v178
    %v218 = vunpack.c.l.b16 %v179
    %v219 = vunpack.c.l.b16 %v180
    %v220 = vunpack.c.l.b16 %v181
    %v221 = vunpack.c.l.b16 %v182
    %v222 = vunpack.c.l.b16 %v183
    %v223 = vunpack.c.l.b16 %v184
    %v224 = vunpack.c.l.b16 %v185
    %v225 = vpack.c.b16 %v210, %v209
    %v226 = vpack.c.b16 %v212, %v211
    %v227 = vpack.c.b16 %v214, %v213
    %v228 = vpack.c.b16 %v216, %v215
    %v229 = vpack.c.b16 %v218, %v217
    %v230 = vpack.c.b16 %v220, %v219
    %v231 = vpack.c.b16 %v222, %v221
    %v232 = vpack.c.b16 %v224, %v223
    %241 = vmatprep.subr.bf16.mxu0 0
    %242 = vmatpush1.bf16.msra.mxu0 %v225
    %243 = vmatprep.subr.bf16.mxu0 0
    %244 = vmatpush1.bf16.msra.mxu0 %v226
    %245 = vmatprep.subr.bf16.mxu0 0
    %246 = vmatpush1.bf16.msra.mxu0 %v227
    %247 = vmatprep.subr.bf16.mxu0 0
    %248 = vmatpush1.bf16.msra.mxu0 %v228
    %249 = vmatprep.subr.bf16.mxu0 0
    %250 = vmatpush1.bf16.msra.mxu0 %v229
    %251 = vmatprep.subr.bf16.mxu0 0
    %252 = vmatpush1.bf16.msra.mxu0 %v230
    %253 = vmatprep.subr.bf16.mxu0 0
    %254 = vmatpush1.bf16.msra.mxu0 %v231
    %255 = vmatprep.subr.bf16.mxu0 0
    %256 = vmatpush1.bf16.msra.mxu0 %v232
    %257 = vmatprep.subr.bf16.mxu0 0
    %258 = vmatpush1.bf16.msra.mxu0 0
    %259 = vmatprep.subr.bf16.mxu0 0
    %260 = vmatpush1.bf16.msra.mxu0 0
    %261 = vmatprep.subr.bf16.mxu0 0
    %262 = vmatpush1.bf16.msra.mxu0 0
    %263 = vmatprep.subr.bf16.mxu0 0
    %264 = vmatpush1.bf16.msra.mxu0 0
    %265 = vmatprep.subr.bf16.mxu0 0
    %266 = vmatpush1.bf16.msra.mxu0 0
    %267 = vmatprep.subr.bf16.mxu0 0
    %268 = vmatpush1.bf16.msra.mxu0 0
    %269 = vmatprep.subr.bf16.mxu0 0
    %270 = vmatpush1.bf16.msra.mxu0 0
    %271 = vmatprep.subr.bf16.mxu0 0
    %272 = vmatpush1.bf16.msra.mxu0 0
    %273 = vmatprep.mubr.bf16.mxu0 0
    %274 = vmatmul.mubr.bf16.gmra.mrb[0].mxu0 %v169
    %v275 = vpop.f32.mrb[0].mxu0
    %v276 = vadd.f32 %v191, %v275
    %v277 = vpop.f32.mrb[0].mxu0
    %v278 = vpop.f32.mrb[0].mxu0
    %v279 = vadd.f32 %v191, %v278
    %v280 = vpop.f32.mrb[0].mxu0
    %281 = vdwg.mxu0
    %v282 = vsub.f32 0.0, %v276
    %v283 = vsub.f32 0.0, %v279
    %v284 = vmin.f32 %v282, 80.0
    %v285 = vmin.f32 %v283, 80.0
    %v286 = vmul.f32 %v284, 1.442695
    %v287 = vpow.pop %v286
    %v288 = vmul.f32 %v285, 1.442695
    %v289 = vpow.pop %v288
    %v290 = vadd.f32 %v287, 1.0
    %v291 = vadd.f32 %v289, 1.0
    %v292 = vrcp.pop %v290
    %v293 = vrcp.pop %v291
    %v294 = vmul.f32 %v276, %v292
    %v295 = vmul.f32 %v279, %v293
    %296 = vst [vmem:[%s5] sm:$0xff] %v294
    %297 = vst [vmem:[%s5 + $0x8] sm:$0xff] %v295
    // Predicated region
    $region26: #{timestep_embedding_forward.1} parent=1 // pred_check
      _
    $region27: #{timestep_embedding_forward.1} parent=1 // pred_check_branch
      %299 = sbr.rel (0) target = $region29
    $region28: #{timestep_embedding_forward.1} parent=1 // pred_region
      _
    $region29: #{timestep_embedding_forward.1} parent=1 // pred_fallthru
      _
    // Predicated region
    $region30: #{timestep_embedding_forward.1} parent=1 // pred_check
      _
    $region31: #{timestep_embedding_forward.1} parent=1 // pred_check_branch
      %301 = sbr.rel (0) target = $region33
    $region32: #{timestep_embedding_forward.1} parent=1 // pred_region
      _
    $region33: #{timestep_embedding_forward.1} parent=1 // pred_fallthru
      _
    %302 = vsyncpa [#allocation3], 1

</llo_original>
